<compile_context>
chip_gen: v7x
topology: tpu7x:2x2x1
jax: 0.10.0
libtpu: 0.0.40
codegen_flags: <defaults>
</compile_context>

<pallas_src>
import functools

import jax
import jax.numpy as jnp
from jax.experimental import pallas as pl
from jax.experimental.pallas import tpu as pltpu


def _round_up(n, m):
    return ((n + m - 1) // m) * m


def _resident_spec(shape):
    """BlockSpec for a weight/bias resident in VMEM for the whole grid.

    Constant index_map => fetched once; Buffered(1) stops Pallas from
    double-buffering it (halves its VMEM footprint).  Returns (spec, bool)
    where the bool says whether single-buffering was applied.
    """
    idx = lambda i: (0,) * len(shape)
    try:
        return pl.BlockSpec(shape, idx, pipeline_mode=pl.Buffered(1)), True
    except (TypeError, AttributeError):
        return pl.BlockSpec(shape, idx), False


def _tpu_defaults():
    """(vmem_capacity_bytes, has_two_tensorcores, no_bf16_vpu), with fallbacks."""
    kind = ""
    try:
        kind = jax.devices()[0].device_kind.lower()
    except Exception:
        pass
    vmem_cap = None
    try:
        vmem_cap = int(pltpu.get_tpu_info().vmem_capacity_bytes)
    except Exception:
        vmem_cap = None
    if vmem_cap is None:
        # v4/v5e/v6e: 128 MiB per core; v7x (and unknown): assume 64 MiB.
        vmem_cap = (128 << 20) if any(g in kind for g in ("v4", "v5", "v6")) \
            else (64 << 20)
    two_tc = "v7" in kind                       # v7x: 2 TensorCores per chip
    no_bf16_vpu = any(g in kind for g in ("v2", "v3", "v4", "v5"))
    return vmem_cap, two_tc, no_bf16_vpu


def _fused_mlp_kernel(*refs, num_layers, compute_dtype, fused_epilogue):
    """refs = (x_ref, w0, b0, ..., w_{L-1}, b_{L-1}, o_ref).

    Chained matmuls on one row tile; all intermediates stay in VMEM/vregs.
    """
    x_ref, o_ref = refs[0], refs[-1]

    h = x_ref[...]
    if h.dtype != compute_dtype:
        h = h.astype(compute_dtype)             # cast in VMEM, not in HBM

    y = None
    for i in range(num_layers):
        w_ref = refs[1 + 2 * i]
        b_ref = refs[2 + 2 * i]
        # MXU matmul with f32 accumulation.
        acc = jnp.dot(h, w_ref[...], preferred_element_type=jnp.float32)
        if i < num_layers - 1:
            if fused_epilogue:
                # bias-add + ReLU in the packed compute dtype (bf16 VPU on
                # v6e/v7x); folds away the separate downcast.
                h = jnp.maximum(
                    acc.astype(compute_dtype) + b_ref[...].astype(compute_dtype),
                    0)
            else:
                # f32 epilogue (v5e-class VPU has no bf16, or f32 compute).
                h = jnp.maximum(acc + b_ref[...], 0.0).astype(compute_dtype)
        else:
            y = acc + b_ref[...]                 # final-layer bias-add in f32

    o_ref[...] = y.astype(o_ref.dtype)


def fused_mlp_forward(x2d, padded_params, out_dim, *, compute_dtype,
                      tile_m=None, out_dtype=None):
    """Run the whole MLP in one pallas_call.  x2d: (M, K), unpadded, any dtype."""
    M, K = x2d.shape
    num_layers = len(padded_params)
    out_dtype = x2d.dtype if out_dtype is None else out_dtype
    n_last = padded_params[-1][0].shape[1]       # lane-padded output width

    vmem_cap, two_tc, no_bf16_vpu = _tpu_defaults()
    budget = vmem_cap - max(12 << 20, vmem_cap // 5)   # headroom for Mosaic scratch

    # ----- resident parameter specs (single-buffered when supported) --------
    param_specs, flat_params = [], []
    single_buffered = True
    for w, b in padded_params:
        ws, okw = _resident_spec(w.shape)
        bs, okb = _resident_spec(b.shape)
        single_buffered = single_buffered and okw and okb
        param_specs += [ws, bs]
        flat_params += [w, b]
    param_factor = 1 if single_buffered else 2

    # ----- row-tile selection (generation aware) ----------------------------
    if tile_m is None:
        # v6e (128 MiB, bf16 VPU): 512-row tiles; v5e / v7x: 256.
        tile_m = 512 if (budget >= (80 << 20) and not no_bf16_vpu) else 256
    tile_m = min(tile_m, _round_up(M, 8))        # never taller than the input
    if two_tc and M > 8:
        # v7x: keep >= 2 row tiles so the parallel axis feeds both TensorCores.
        tile_m = min(tile_m, _round_up(pl.cdiv(M, 2), 8))
    tile_m = max(8, _round_up(tile_m, 8))

    def vmem_needed(tm):
        csize = jnp.dtype(compute_dtype).itemsize
        v = 2 * tm * K * jnp.dtype(x2d.dtype).itemsize           # x (double buf)
        v += 2 * tm * n_last * jnp.dtype(out_dtype).itemsize     # out (double buf)
        v += param_factor * sum(
            w.size * jnp.dtype(w.dtype).itemsize +
            b.size * jnp.dtype(b.dtype).itemsize for w, b in padded_params)
        max_in = max(w.shape[0] for w, _ in padded_params)
        max_out = max(w.shape[1] for w, _ in padded_params)
        v += tm * max_in * csize                 # live activation h
        v += tm * max_out * (4 + csize)          # f32 accumulator + downcast
        return v

    while tile_m > 8 and vmem_needed(tile_m) > budget:
        tile_m = max(8, _round_up(tile_m // 2, 8))
    grid_m = pl.cdiv(M, tile_m)                  # ragged last block handled by Pallas

    vmem_limit = int(vmem_needed(tile_m) * 1.3) + (8 << 20)
    vmem_limit = max(32 << 20, min(vmem_limit, budget))

    in_specs = [pl.BlockSpec((tile_m, K), lambda i: (i, 0))] + param_specs
    out_spec = pl.BlockSpec((tile_m, n_last), lambda i: (i, 0))

    fused_epilogue = (jnp.dtype(compute_dtype) != jnp.dtype(jnp.float32)
                      and not no_bf16_vpu)

    kernel = functools.partial(
        _fused_mlp_kernel, num_layers=num_layers,
        compute_dtype=compute_dtype, fused_epilogue=fused_epilogue)

    out = pl.pallas_call(
        kernel,
        out_shape=jax.ShapeDtypeStruct((M, n_last), out_dtype),
        grid_spec=pltpu.PrefetchScalarGridSpec(
            num_scalar_prefetch=0,
            grid=(grid_m,),
            in_specs=in_specs,
            out_specs=out_spec,
        ),
        compiler_params=pltpu.CompilerParams(
            dimension_semantics=("parallel",),   # row tiles shard across TCs
            vmem_limit_bytes=vmem_limit,
        ),
    )(x2d, *flat_params)

    return out if n_last == out_dim else out[:, :out_dim]


def make_mlp_params(input_dim, hidden_dim, output_dim, num_layers, key):
    """Deterministic f32 master params, (in, out) layout: y = x @ W + b."""
    h = [hidden_dim] * (num_layers - 1)
    dims_in = [input_dim] + h
    dims_out = h + [output_dim]
    params = []
    for n, k in zip(dims_in, dims_out):
        key, kw, kb = jax.random.split(key, 3)
        bound = 1.0 / (n ** 0.5)                 # torch default Linear scale
        w = jax.random.uniform(kw, (n, k), jnp.float32, -bound, bound)
        b = jax.random.uniform(kb, (k,), jnp.float32, -bound, bound)
        params.append((w, b))
    return params


class MLPPallas:
    """Mirror of the PyTorch MLP: Linear->ReLU repeated, last layer no ReLU."""

    def __init__(self, params_f32, *, compute_dtype=jnp.bfloat16, tile_m=None):
        self.num_layers = len(params_f32)
        self.output_dim = params_f32[-1][0].shape[1]
        self.compute_dtype = compute_dtype
        self.tile_m = tile_m
        # Pre-pad every layer's output dim to a multiple of 128 (lane-dense
        # matmuls/stores) and cast weights to the matmul dtype once, at init.
        # Zero-padded rows/cols contribute exactly zero, so results match.
        self.padded_params = []
        prev_in = params_f32[0][0].shape[0]      # input feature dim, unpadded
        for w, b in params_f32:
            d_in, d_out = w.shape
            d_out_pad = _round_up(d_out, 128)
            w_p = jnp.zeros((prev_in, d_out_pad), compute_dtype)
            w_p = w_p.at[:d_in, :d_out].set(w.astype(compute_dtype))
            b_p = jnp.zeros((1, d_out_pad), jnp.float32).at[0, :d_out].set(b)
            self.padded_params.append((w_p, b_p))
            prev_in = d_out_pad
        # TODO(synk): optional fp8 weight storage on v7x (2x MXU rate) if the
        # hidden layers ever become MXU-bound at production DETR shapes.

    def __call__(self, x):
        lead = x.shape[:-1]
        xm = x.reshape(-1, x.shape[-1])
        ym = fused_mlp_forward(
            xm, self.padded_params, self.output_dim,
            compute_dtype=self.compute_dtype, tile_m=self.tile_m,
            out_dtype=x.dtype)
        return ym.reshape(*lead, self.output_dim)


def _reference_mlp(x, params, num_layers):
    lead = x.shape[:-1]
    xm = x.reshape(-1, x.shape[-1])
    for i, (w, b) in enumerate(params):
        xm = xm @ w + b
        if i < num_layers - 1:
            xm = jnp.maximum(xm, 0.0)
    return xm.reshape(*lead, xm.shape[-1])


if __name__ == "__main__":
    key = jax.random.PRNGKey(0)
    k_x, k_p = jax.random.split(key)

    # Small shapes consistent with the module: (batch, num_queries, input_dim).
    batch, seq, input_dim, hidden_dim, output_dim, num_layers = 2, 8, 32, 64, 4, 3
    x = jax.random.normal(k_x, (batch, seq, input_dim), jnp.float32)

    params = make_mlp_params(input_dim, hidden_dim, output_dim, num_layers, k_p)
    y_ref = _reference_mlp(x, params, num_layers)

    # bf16-matmul fused kernel (v6e/v7x fast path), f32 accumulation.
    mlp_bf16 = MLPPallas(params, compute_dtype=jnp.bfloat16)
    y_bf16 = jax.block_until_ready(mlp_bf16(x))
    assert y_bf16.shape == (batch, seq, output_dim)
    assert jnp.allclose(y_bf16, y_ref, atol=3e-2, rtol=3e-2)

    # f32-matmul path: exactness check of the fused / padded / tiled pipeline.
    mlp_f32 = MLPPallas(params, compute_dtype=jnp.float32)
    y_f32 = jax.block_until_ready(mlp_f32(x))
    assert y_f32.shape == (batch, seq, output_dim)
    assert jnp.allclose(y_f32, y_ref, atol=1e-5, rtol=1e-5)

    print("KERNEL_OK")
</pallas_src>

<mosaic_0001>
module attributes {stable_mosaic.version = 11 : i64} {
  func.func @_fused_mlp_kernel(%arg0: i32, %arg1: memref<16x32xf32, #tpu.memory_space<vmem>>, %arg2: memref<32x128xbf16, #tpu.memory_space<vmem>>, %arg3: memref<1x128xf32, #tpu.memory_space<vmem>>, %arg4: memref<128x128xbf16, #tpu.memory_space<vmem>>, %arg5: memref<1x128xf32, #tpu.memory_space<vmem>>, %arg6: memref<128x128xbf16, #tpu.memory_space<vmem>>, %arg7: memref<1x128xf32, #tpu.memory_space<vmem>>, %arg8: memref<16x128xf32, #tpu.memory_space<vmem>>) attributes {dimension_semantics = [#tpu.dimension_semantics<parallel>], iteration_bounds = array<i64: 1>, scalar_prefetch = 0 : i64, scratch_operands = 0 : i64, tpu.core_type = #tpu.core_type<tc>, window_params = [{transform_indices = @transform_0, window_bounds = array<i64: 16, 32>}, {pipeline_mode = #tpu.pipeline_mode<synchronous>, transform_indices = @transform_1, window_bounds = array<i64: 32, 128>}, {pipeline_mode = #tpu.pipeline_mode<synchronous>, transform_indices = @transform_2, window_bounds = array<i64: 1, 128>}, {pipeline_mode = #tpu.pipeline_mode<synchronous>, transform_indices = @transform_3, window_bounds = array<i64: 128, 128>}, {pipeline_mode = #tpu.pipeline_mode<synchronous>, transform_indices = @transform_4, window_bounds = array<i64: 1, 128>}, {pipeline_mode = #tpu.pipeline_mode<synchronous>, transform_indices = @transform_5, window_bounds = array<i64: 128, 128>}, {pipeline_mode = #tpu.pipeline_mode<synchronous>, transform_indices = @transform_6, window_bounds = array<i64: 1, 128>}, {transform_indices = @transform_7, window_bounds = array<i64: 16, 128>}]} {
    %c0 = arith.constant 0 : index
    %c0_0 = arith.constant 0 : index
    %0 = vector.load %arg1[%c0, %c0_0] : memref<16x32xf32, #tpu.memory_space<vmem>>, vector<16x32xf32>
    %1 = arith.truncf %0 : vector<16x32xf32> to vector<16x32xbf16>
    %c0_1 = arith.constant 0 : index
    %c0_2 = arith.constant 0 : index
    %2 = vector.load %arg2[%c0_1, %c0_2] : memref<32x128xbf16, #tpu.memory_space<vmem>>, vector<32x128xbf16>
    %cst = arith.constant dense<0.000000e+00> : vector<16x128xf32>
    %3 = tpu.matmul %1, %2, %cst {dimension_numbers = #tpu.dot_dimension_numbers<[1], [0], [0], [1], [0, 0, 1, 1], [], []>} : vector<16x32xbf16>, vector<32x128xbf16>, vector<16x128xf32> -> vector<16x128xf32>
    %4 = arith.truncf %3 : vector<16x128xf32> to vector<16x128xbf16>
    %c0_3 = arith.constant 0 : index
    %c0_4 = arith.constant 0 : index
    %5 = vector.load %arg3[%c0_3, %c0_4] : memref<1x128xf32, #tpu.memory_space<vmem>>, vector<1x128xf32>
    %6 = arith.truncf %5 : vector<1x128xf32> to vector<1x128xbf16>
    %7 = vector.broadcast %6 : vector<1x128xbf16> to vector<16x128xbf16>
    %8 = arith.addf %4, %7 : vector<16x128xbf16>
    %cst_5 = arith.constant 0.000000e+00 : bf16
    %9 = vector.broadcast %cst_5 : bf16 to vector<16x128xbf16>
    %10 = arith.maximumf %8, %9 : vector<16x128xbf16>
    %c0_6 = arith.constant 0 : index
    %c0_7 = arith.constant 0 : index
    %11 = vector.load %arg4[%c0_6, %c0_7] : memref<128x128xbf16, #tpu.memory_space<vmem>>, vector<128x128xbf16>
    %cst_8 = arith.constant dense<0.000000e+00> : vector<16x128xf32>
    %12 = tpu.matmul %10, %11, %cst_8 {dimension_numbers = #tpu.dot_dimension_numbers<[1], [0], [0], [1], [0, 0, 1, 1], [], []>} : vector<16x128xbf16>, vector<128x128xbf16>, vector<16x128xf32> -> vector<16x128xf32>
    %13 = arith.truncf %12 : vector<16x128xf32> to vector<16x128xbf16>
    %c0_9 = arith.constant 0 : index
    %c0_10 = arith.constant 0 : index
    %14 = vector.load %arg5[%c0_9, %c0_10] : memref<1x128xf32, #tpu.memory_space<vmem>>, vector<1x128xf32>
    %15 = arith.truncf %14 : vector<1x128xf32> to vector<1x128xbf16>
    %16 = vector.broadcast %15 : vector<1x128xbf16> to vector<16x128xbf16>
    %17 = arith.addf %13, %16 : vector<16x128xbf16>
    %cst_11 = arith.constant 0.000000e+00 : bf16
    %18 = vector.broadcast %cst_11 : bf16 to vector<16x128xbf16>
    %19 = arith.maximumf %17, %18 : vector<16x128xbf16>
    %c0_12 = arith.constant 0 : index
    %c0_13 = arith.constant 0 : index
    %20 = vector.load %arg6[%c0_12, %c0_13] : memref<128x128xbf16, #tpu.memory_space<vmem>>, vector<128x128xbf16>
    %cst_14 = arith.constant dense<0.000000e+00> : vector<16x128xf32>
    %21 = tpu.matmul %19, %20, %cst_14 {dimension_numbers = #tpu.dot_dimension_numbers<[1], [0], [0], [1], [0, 0, 1, 1], [], []>} : vector<16x128xbf16>, vector<128x128xbf16>, vector<16x128xf32> -> vector<16x128xf32>
    %c0_15 = arith.constant 0 : index
    %c0_16 = arith.constant 0 : index
    %22 = vector.load %arg7[%c0_15, %c0_16] : memref<1x128xf32, #tpu.memory_space<vmem>>, vector<1x128xf32>
    %23 = vector.broadcast %22 : vector<1x128xf32> to vector<16x128xf32>
    %24 = arith.addf %21, %23 : vector<16x128xf32>
    %c0_17 = arith.constant 0 : index
    %c0_18 = arith.constant 0 : index
    %25 = vector.load %arg8[%c0_17, %c0_18] : memref<16x128xf32, #tpu.memory_space<vmem>>, vector<16x128xf32>
    tpu.vector_store %arg8[%c0_17, %c0_18], %24 {strides = array<i32>} : memref<16x128xf32, #tpu.memory_space<vmem>>, vector<16x128xf32>,
    return
  }
  func.func @transform_0(%arg0: i32) -> (i32, i32) {
    %c0_i32 = arith.constant 0 : i32
    %c0_i32_0 = arith.constant 0 : i32
    return %arg0, %c0_i32 : i32, i32
  }
  func.func @transform_1(%arg0: i32) -> (i32, i32) {
    %c0_i32 = arith.constant 0 : i32
    %c0_i32_0 = arith.constant 0 : i32
    %c0_i32_1 = arith.constant 0 : i32
    return %c0_i32, %c0_i32_0 : i32, i32
  }
  func.func @transform_2(%arg0: i32) -> (i32, i32) {
    %c0_i32 = arith.constant 0 : i32
    %c0_i32_0 = arith.constant 0 : i32
    %c0_i32_1 = arith.constant 0 : i32
    return %c0_i32, %c0_i32_0 : i32, i32
  }
  func.func @transform_3(%arg0: i32) -> (i32, i32) {
    %c0_i32 = arith.constant 0 : i32
    %c0_i32_0 = arith.constant 0 : i32
    %c0_i32_1 = arith.constant 0 : i32
    return %c0_i32, %c0_i32_0 : i32, i32
  }
  func.func @transform_4(%arg0: i32) -> (i32, i32) {
    %c0_i32 = arith.constant 0 : i32
    %c0_i32_0 = arith.constant 0 : i32
    %c0_i32_1 = arith.constant 0 : i32
    return %c0_i32, %c0_i32_0 : i32, i32
  }
  func.func @transform_5(%arg0: i32) -> (i32, i32) {
    %c0_i32 = arith.constant 0 : i32
    %c0_i32_0 = arith.constant 0 : i32
    %c0_i32_1 = arith.constant 0 : i32
    return %c0_i32, %c0_i32_0 : i32, i32
  }
  func.func @transform_6(%arg0: i32) -> (i32, i32) {
    %c0_i32 = arith.constant 0 : i32
    %c0_i32_0 = arith.constant 0 : i32
    %c0_i32_1 = arith.constant 0 : i32
    return %c0_i32, %c0_i32_0 : i32, i32
  }
  func.func @transform_7(%arg0: i32) -> (i32, i32) {
    %c0_i32 = arith.constant 0 : i32
    %c0_i32_0 = arith.constant 0 : i32
    return %arg0, %c0_i32 : i32, i32
  }
}

</mosaic_0001>

<llo_original>
// kernel: tpu_custom_call.1
$region0: #{tpu_custom_call.1}
  #allocation0 [shape = 'u32[]', space=smem, size = 0x4, offset = 0x4, fixed_abs, tag = 'smem constant byte address 0x4 - core index']
  #allocation1 [shape = 'u32[144,128]{1,0:T(1,128)}', space=vmem, size = 0x12000, scoped, tag = 'internal scratch']
  %s0 = inlined_call_operand.hbm [shape: f32[16,32], index: 0, kind: input, shape index: {}]
  %s1 = inlined_call_operand.hbm [shape: bf16[32,128], index: 1, kind: input, shape index: {}]
  %s2 = inlined_call_operand.vmem [shape: f32[1,128], index: 2, kind: input, shape index: {}]
  %s3 = inlined_call_operand.hbm [shape: bf16[128,128], index: 3, kind: input, shape index: {}]
  %s4 = inlined_call_operand.vmem [shape: f32[1,128], index: 4, kind: input, shape index: {}]
  %s5 = inlined_call_operand.hbm [shape: bf16[128,128], index: 5, kind: input, shape index: {}]
  %s6 = inlined_call_operand.vmem [shape: f32[1,128], index: 6, kind: input, shape index: {}]
  %s7 = inlined_call_operand.hbm [shape: f32[16,128], index: 7, kind: output, shape index: {}]
  %s8 = sld [smem:[#allocation0]]
  $region54: #{tpu_custom_call.1} parent=0
    _
  %s10 = ssub.s32 1, %s8
  %s11 = scalar_select 0, %s10, %s8
  $region1: #{tpu_custom_call.1} parent=0
    #allocation2 [shape = 'u8[8192]{0}', space=vmem, size = 0x2000, scoped, tag = 'input window, operand 0, single buffered']
    #allocation3 [shape = 's32[1]{0}', space=sflag, size = 0x4, scoped, tag = 'scoped memory for tpu_custom_call.1']
    #allocation4 [shape = 's32[1]{0}', space=sflag, size = 0x4, scoped, tag = 'scoped memory for tpu_custom_call.1']
    #allocation5 [shape = 'u8[8192]{0}', space=vmem, size = 0x2000, scoped, tag = 'input window, operand 1, single buffered']
    #allocation6 [shape = 's32[1]{0}', space=sflag, size = 0x4, scoped, tag = 'scoped memory for tpu_custom_call.1']
    #allocation7 [shape = 'u8[32768]{0}', space=vmem, size = 0x8000, scoped, tag = 'input window, operand 3, single buffered']
    #allocation8 [shape = 'u8[32768]{0}', space=vmem, size = 0x8000, scoped, tag = 'input window, operand 5, single buffered']
    #allocation9 [shape = 's32[1]{0}', space=sflag, size = 0x4, scoped, tag = 'scoped memory for tpu_custom_call.1']
    #allocation10 [shape = 'u8[8192]{0}', space=vmem, size = 0x2000, scoped, tag = 'output window, operand 0, single buffered']
    %12 = vsyncpa [#allocation3], 0
    %13 = vsyncpa [#allocation6], 0
    %14 = vsyncpa [#allocation9], 0
    %15 = vsyncpa [#allocation4], 0
    // Predicated region
    $region2: #{tpu_custom_call.1} parent=1 // pred_check
      _
    $region3: #{tpu_custom_call.1} parent=1 // pred_check_branch
      %17 = sbr.rel (0) target = $region5
    $region4: #{tpu_custom_call.1} parent=1 // pred_region
      %s19 = ssub.s32 256, 256
      %20 = vsyncadd [#allocation3], %s19
      %s21 = sshll.u32 [#allocation2], 4
      %s22 = int_to_ptr.vmem [resolvable:$true] %s21
      %27 = dma.hbm_to_vmem [thread:$0]  %s0, 256, %s22, [#allocation3], 128, 128, 8
    $region5: #{tpu_custom_call.1} parent=1 // pred_fallthru
      _
    // Predicated region
    $region6: #{tpu_custom_call.1} parent=1 // pred_check
      _
    $region7: #{tpu_custom_call.1} parent=1 // pred_check_branch
      %29 = sbr.rel (0) target = $region9
    $region8: #{tpu_custom_call.1} parent=1 // pred_region
      %s31 = ssub.s32 256, 256
      %32 = vsyncadd [#allocation6], %s31
      %s33 = sshll.u32 [#allocation5], 4
      %s34 = int_to_ptr.vmem [resolvable:$true] %s33
      %39 = dma.hbm_to_vmem [thread:$0]  %s1, 256, %s34, [#allocation6], 64, 64, 4
    $region9: #{tpu_custom_call.1} parent=1 // pred_fallthru
      _
    // Predicated region
    $region10: #{tpu_custom_call.1} parent=1 // pred_check
      _
    $region11: #{tpu_custom_call.1} parent=1 // pred_check_branch
      %41 = sbr.rel (0) target = $region13
    $region12: #{tpu_custom_call.1} parent=1 // pred_region
      _
    $region13: #{tpu_custom_call.1} parent=1 // pred_fallthru
      _
    // Predicated region
    $region14: #{tpu_custom_call.1} parent=1 // pred_check
      _
    $region15: #{tpu_custom_call.1} parent=1 // pred_check_branch
      %43 = sbr.rel (0) target = $region17
    $region16: #{tpu_custom_call.1} parent=1 // pred_region
      %s45 = ssub.s32 1024, 1024
      %46 = vsyncadd [#allocation6], %s45
      %s47 = sshll.u32 [#allocation7], 4
      %s48 = int_to_ptr.vmem [resolvable:$true] %s47
      %53 = dma.hbm_to_vmem [thread:$0]  %s3, 1024, %s48, [#allocation6], 64, 64, 4
    $region17: #{tpu_custom_call.1} parent=1 // pred_fallthru
      _
    // Predicated region
    $region18: #{tpu_custom_call.1} parent=1 // pred_check
      _
    $region19: #{tpu_custom_call.1} parent=1 // pred_check_branch
      %55 = sbr.rel (0) target = $region21
    $region20: #{tpu_custom_call.1} parent=1 // pred_region
      _
    $region21: #{tpu_custom_call.1} parent=1 // pred_fallthru
      _
    // Predicated region
    $region22: #{tpu_custom_call.1} parent=1 // pred_check
      _
    $region23: #{tpu_custom_call.1} parent=1 // pred_check_branch
      %57 = sbr.rel (0) target = $region25
    $region24: #{tpu_custom_call.1} parent=1 // pred_region
      %s59 = ssub.s32 1024, 1024
      %60 = vsyncadd [#allocation9], %s59
      %s61 = sshll.u32 [#allocation8], 4
      %s62 = int_to_ptr.vmem [resolvable:$true] %s61
      %67 = dma.hbm_to_vmem [thread:$0]  %s5, 1024, %s62, [#allocation9], 64, 64, 4
    $region25: #{tpu_custom_call.1} parent=1 // pred_fallthru
      _
    // Predicated region
    $region26: #{tpu_custom_call.1} parent=1 // pred_check
      _
    $region27: #{tpu_custom_call.1} parent=1 // pred_check_branch
      %69 = sbr.rel (0) target = $region29
    $region28: #{tpu_custom_call.1} parent=1 // pred_region
      _
    $region29: #{tpu_custom_call.1} parent=1 // pred_fallthru
      _
    // Predicated region
    $region30: #{tpu_custom_call.1} parent=1 // pred_check
      _
    $region31: #{tpu_custom_call.1} parent=1 // pred_check_branch
      %71 = sbr.rel (0) target = $region33
    $region32: #{tpu_custom_call.1} parent=1 // pred_region
      %72 = dma.done [#allocation3], 256
    $region33: #{tpu_custom_call.1} parent=1 // pred_fallthru
      _
    // Predicated region
    $region34: #{tpu_custom_call.1} parent=1 // pred_check
      _
    $region35: #{tpu_custom_call.1} parent=1 // pred_check_branch
      %74 = sbr.rel (0) target = $region37
    $region36: #{tpu_custom_call.1} parent=1 // pred_region
      %75 = dma.done [#allocation6], 256
    $region37: #{tpu_custom_call.1} parent=1 // pred_fallthru
      _
    // Predicated region
    $region38: #{tpu_custom_call.1} parent=1 // pred_check
      _
    $region39: #{tpu_custom_call.1} parent=1 // pred_check_branch
      %77 = sbr.rel (0) target = $region41
    $region40: #{tpu_custom_call.1} parent=1 // pred_region
      %78 = dma.done [#allocation6], 1024
    $region41: #{tpu_custom_call.1} parent=1 // pred_fallthru
      _
    // Predicated region
    $region42: #{tpu_custom_call.1} parent=1 // pred_check
      _
    $region43: #{tpu_custom_call.1} parent=1 // pred_check_branch
      %80 = sbr.rel (0) target = $region45
    $region44: #{tpu_custom_call.1} parent=1 // pred_region
      %81 = dma.done [#allocation9], 1024
    $region45: #{tpu_custom_call.1} parent=1 // pred_fallthru
      _
    %v83 = vld [vmem:[#allocation2] sm:$0xff]
    %v84 = vld [vmem:[#allocation2 + $0x8] sm:$0xff]
    %v85 = vpack.c.bf16 %v84, %v83
    %v86 = vld [vmem:[#allocation5] sm:$0xf]
    %v87 = vld [vmem:[#allocation5 + $0x4] sm:$0xf]
    %v88 = vld [vmem:[#allocation5 + $0x8] sm:$0xf]
    %v89 = vld [vmem:[#allocation5 + $0xc] sm:$0xf]
    %v94 = vunpack.c.l.b16 %v86
    %v95 = vunpack.c.l.b16 %v87
    %v96 = vunpack.c.l.b16 %v88
    %v97 = vunpack.c.l.b16 %v89
    %v98 = vpack.c.b16 %v95, %v94
    %v99 = vpack.c.b16 %v97, %v96
    %vm102 = vcmask 261120
    %v104 = vsel %vm102, %v85, 0
    %106 = vmatprep.subr.bf16.mxu0 0
    %107 = vmatpush1.bf16.msra.mxu0 %v98
    %108 = vmatprep.subr.bf16.mxu0 0
    %109 = vmatpush1.bf16.msra.mxu0 %v99
    %110 = vmatprep.subr.bf16.mxu0 0
    %111 = vmatpush1.bf16.msra.mxu0 0
    %112 = vmatprep.subr.bf16.mxu0 0
    %113 = vmatpush1.bf16.msra.mxu0 0
    %114 = vmatprep.subr.bf16.mxu0 0
    %115 = vmatpush1.bf16.msra.mxu0 0
    %116 = vmatprep.subr.bf16.mxu0 0
    %117 = vmatpush1.bf16.msra.mxu0 0
    %118 = vmatprep.subr.bf16.mxu0 0
    %119 = vmatpush1.bf16.msra.mxu0 0
    %120 = vmatprep.subr.bf16.mxu0 0
    %121 = vmatpush1.bf16.msra.mxu0 0
    %122 = vmatprep.subr.bf16.mxu0 0
    %123 = vmatpush1.bf16.msra.mxu0 0
    %124 = vmatprep.subr.bf16.mxu0 0
    %125 = vmatpush1.bf16.msra.mxu0 0
    %126 = vmatprep.subr.bf16.mxu0 0
    %127 = vmatpush1.bf16.msra.mxu0 0
    %128 = vmatprep.subr.bf16.mxu0 0
    %129 = vmatpush1.bf16.msra.mxu0 0
    %130 = vmatprep.subr.bf16.mxu0 0
    %131 = vmatpush1.bf16.msra.mxu0 0
    %132 = vmatprep.subr.bf16.mxu0 0
    %133 = vmatpush1.bf16.msra.mxu0 0
    %134 = vmatprep.subr.bf16.mxu0 0
    %135 = vmatpush1.bf16.msra.mxu0 0
    %136 = vmatprep.subr.bf16.mxu0 0
    %137 = vmatpush1.bf16.msra.mxu0 0
    %138 = vmatprep.mubr.bf16.mxu0 0
    %139 = vmatmul.mubr.bf16.gmra.mrb[0].mxu0 %v104
    %v140 = vpop.f32.mrb[0].mxu0
    %v141 = vadd.f32 0.0, %v140
    %v142 = vpop.f32.mrb[0].mxu0
    %v143 = vpop.f32.mrb[0].mxu0
    %v144 = vadd.f32 0.0, %v143
    %v145 = vpop.f32.mrb[0].mxu0
    %146 = vdwg.mxu0
    %v147 = vpack.c.bf16 %v144, %v141
    %v148 = vld [vmem:[%s2] sm:$0x1]
    %v149 = vpack.c.bf16 %v148, %v148
    %v151 = vpack.i.b16 %v149, %v149
    %v153 = vlaneseq
    %v154 = vshrl.u32 %v153, 7
    %v155 = vsub.s32 0, %v154
    %v156 = vrot.slane %v151, %v155
    %v157 = vadd.bf16 %v147, %v156
    %v158 = vmax.bf16 %v157, 0
    %v159 = vld [vmem:[#allocation7] sm:$0xf]
    %v160 = vld [vmem:[#allocation7 + $0x4] sm:$0xf]
    %v161 = vld [vmem:[#allocation7 + $0x8] sm:$0xf]
    %v162 = vld [vmem:[#allocation7 + $0xc] sm:$0xf]
    %v163 = vld [vmem:[#allocation7 + $0x10] sm:$0xf]
    %v164 = vld [vmem:[#allocation7 + $0x14] sm:$0xf]
    %v165 = vld [vmem:[#allocation7 + $0x18] sm:$0xf]
    %v166 = vld [vmem:[#allocation7 + $0x1c] sm:$0xf]
    %v167 = vld [vmem:[#allocation7 + $0x20] sm:$0xf]
    %v168 = vld [vmem:[#allocation7 + $0x24] sm:$0xf]
    %v169 = vld [vmem:[#allocation7 + $0x28] sm:$0xf]
    %v170 = vld [vmem:[#allocation7 + $0x2c] sm:$0xf]
    %v171 = vld [vmem:[#allocation7 + $0x30] sm:$0xf]
    %v172 = vld [vmem:[#allocation7 + $0x34] sm:$0xf]
    %v173 = vld [vmem:[#allocation7 + $0x38] sm:$0xf]
    %v174 = vld [vmem:[#allocation7 + $0x3c] sm:$0xf]
    %v191 = vunpack.c.l.b16 %v159
    %v192 = vunpack.c.l.b16 %v160
    %v193 = vunpack.c.l.b16 %v161
    %v194 = vunpack.c.l.b16 %v162
    %v195 = vunpack.c.l.b16 %v163
    %v196 = vunpack.c.l.b16 %v164
    %v197 = vunpack.c.l.b16 %v165
    %v198 = vunpack.c.l.b16 %v166
    %v199 = vunpack.c.l.b16 %v167
    %v200 = vunpack.c.l.b16 %v168
    %v201 = vunpack.c.l.b16 %v169
    %v202 = vunpack.c.l.b16 %v170
    %v203 = vunpack.c.l.b16 %v171
    %v204 = vunpack.c.l.b16 %v172
    %v205 = vunpack.c.l.b16 %v173
    %v206 = vunpack.c.l.b16 %v174
    %v207 = vpack.c.b16 %v192, %v191
    %v208 = vpack.c.b16 %v194, %v193
    %v209 = vpack.c.b16 %v196, %v195
    %v210 = vpack.c.b16 %v198, %v197
    %v211 = vpack.c.b16 %v200, %v199
    %v212 = vpack.c.b16 %v202, %v201
    %v213 = vpack.c.b16 %v204, %v203
    %v214 = vpack.c.b16 %v206, %v205
    %223 = vmatprep.subr.bf16.mxu0 0
    %224 = vmatpush1.bf16.msra.mxu0 %v207
    %225 = vmatprep.subr.bf16.mxu0 0
    %226 = vmatpush1.bf16.msra.mxu0 %v208
    %227 = vmatprep.subr.bf16.mxu0 0
    %228 = vmatpush1.bf16.msra.mxu0 %v209
    %229 = vmatprep.subr.bf16.mxu0 0
    %230 = vmatpush1.bf16.msra.mxu0 %v210
    %231 = vmatprep.subr.bf16.mxu0 0
    %232 = vmatpush1.bf16.msra.mxu0 %v211
    %233 = vmatprep.subr.bf16.mxu0 0
    %234 = vmatpush1.bf16.msra.mxu0 %v212
    %235 = vmatprep.subr.bf16.mxu0 0
    %236 = vmatpush1.bf16.msra.mxu0 %v213
    %237 = vmatprep.subr.bf16.mxu0 0
    %238 = vmatpush1.bf16.msra.mxu0 %v214
    %239 = vmatprep.subr.bf16.mxu0 0
    %240 = vmatpush1.bf16.msra.mxu0 0
    %241 = vmatprep.subr.bf16.mxu0 0
    %242 = vmatpush1.bf16.msra.mxu0 0
    %243 = vmatprep.subr.bf16.mxu0 0
    %244 = vmatpush1.bf16.msra.mxu0 0
    %245 = vmatprep.subr.bf16.mxu0 0
    %246 = vmatpush1.bf16.msra.mxu0 0
    %247 = vmatprep.subr.bf16.mxu0 0
    %248 = vmatpush1.bf16.msra.mxu0 0
    %249 = vmatprep.subr.bf16.mxu0 0
    %250 = vmatpush1.bf16.msra.mxu0 0
    %251 = vmatprep.subr.bf16.mxu0 0
    %252 = vmatpush1.bf16.msra.mxu0 0
    %253 = vmatprep.subr.bf16.mxu0 0
    %254 = vmatpush1.bf16.msra.mxu0 0
    %255 = vmatprep.mubr.bf16.mxu0 0
    %256 = vmatmul.mubr.bf16.gmra.mrb[0].mxu0 %v158
    %v257 = vpop.f32.mrb[0].mxu0
    %v258 = vadd.f32 0.0, %v257
    %v259 = vpop.f32.mrb[0].mxu0
    %v260 = vpop.f32.mrb[0].mxu0
    %v261 = vadd.f32 0.0, %v260
    %v262 = vpop.f32.mrb[0].mxu0
    %263 = vdwg.mxu0
    %v264 = vpack.c.bf16 %v261, %v258
    %v265 = vld [vmem:[%s4] sm:$0x1]
    %v266 = vpack.c.bf16 %v265, %v265
    %v268 = vpack.i.b16 %v266, %v266
    %v270 = vlaneseq
    %v271 = vshrl.u32 %v270, 7
    %v272 = vsub.s32 0, %v271
    %v273 = vrot.slane %v268, %v272
    %v274 = vadd.bf16 %v264, %v273
    %v275 = vmax.bf16 %v274, 0
    %v276 = vld [vmem:[#allocation8] sm:$0xf]
    %v277 = vld [vmem:[#allocation8 + $0x4] sm:$0xf]
    %v278 = vld [vmem:[#allocation8 + $0x8] sm:$0xf]
    %v279 = vld [vmem:[#allocation8 + $0xc] sm:$0xf]
    %v280 = vld [vmem:[#allocation8 + $0x10] sm:$0xf]
    %v281 = vld [vmem:[#allocation8 + $0x14] sm:$0xf]
    %v282 = vld [vmem:[#allocation8 + $0x18] sm:$0xf]
    %v283 = vld [vmem:[#allocation8 + $0x1c] sm:$0xf]
    %v284 = vld [vmem:[#allocation8 + $0x20] sm:$0xf]
    %v285 = vld [vmem:[#allocation8 + $0x24] sm:$0xf]
    %v286 = vld [vmem:[#allocation8 + $0x28] sm:$0xf]
    %v287 = vld [vmem:[#allocation8 + $0x2c] sm:$0xf]
    %v288 = vld [vmem:[#allocation8 + $0x30] sm:$0xf]
    %v289 = vld [vmem:[#allocation8 + $0x34] sm:$0xf]
    %v290 = vld [vmem:[#allocation8 + $0x38] sm:$0xf]
    %v291 = vld [vmem:[#allocation8 + $0x3c] sm:$0xf]
    %v292 = vld [vmem:[%s6] sm:$0x1]
    %v294 = vlaneseq
    %v295 = vshrl.u32 %v294, 7
    %v296 = vsub.s32 0, %v295
    %v297 = vrot.slane %v292, %v296
    %v315 = vunpack.c.l.b16 %v276
    %v316 = vunpack.c.l.b16 %v277
    %v317 = vunpack.c.l.b16 %v278
    %v318 = vunpack.c.l.b16 %v279
    %v319 = vunpack.c.l.b16 %v280
    %v320 = vunpack.c.l.b16 %v281
    %v321 = vunpack.c.l.b16 %v282
    %v322 = vunpack.c.l.b16 %v283
    %v323 = vunpack.c.l.b16 %v284
    %v324 = vunpack.c.l.b16 %v285
    %v325 = vunpack.c.l.b16 %v286
    %v326 = vunpack.c.l.b16 %v287
    %v327 = vunpack.c.l.b16 %v288
    %v328 = vunpack.c.l.b16 %v289
    %v329 = vunpack.c.l.b16 %v290
    %v330 = vunpack.c.l.b16 %v291
    %v331 = vpack.c.b16 %v316, %v315
    %v332 = vpack.c.b16 %v318, %v317
    %v333 = vpack.c.b16 %v320, %v319
    %v334 = vpack.c.b16 %v322, %v321
    %v335 = vpack.c.b16 %v324, %v323
    %v336 = vpack.c.b16 %v326, %v325
    %v337 = vpack.c.b16 %v328, %v327
    %v338 = vpack.c.b16 %v330, %v329
    %347 = vmatprep.subr.bf16.mxu0 0
    %348 = vmatpush1.bf16.msra.mxu0 %v331
    %349 = vmatprep.subr.bf16.mxu0 0
    %350 = vmatpush1.bf16.msra.mxu0 %v332
    %351 = vmatprep.subr.bf16.mxu0 0
    %352 = vmatpush1.bf16.msra.mxu0 %v333
    %353 = vmatprep.subr.bf16.mxu0 0
    %354 = vmatpush1.bf16.msra.mxu0 %v334
    %355 = vmatprep.subr.bf16.mxu0 0
    %356 = vmatpush1.bf16.msra.mxu0 %v335
    %357 = vmatprep.subr.bf16.mxu0 0
    %358 = vmatpush1.bf16.msra.mxu0 %v336
    %359 = vmatprep.subr.bf16.mxu0 0
    %360 = vmatpush1.bf16.msra.mxu0 %v337
    %361 = vmatprep.subr.bf16.mxu0 0
    %362 = vmatpush1.bf16.msra.mxu0 %v338
    %363 = vmatprep.subr.bf16.mxu0 0
    %364 = vmatpush1.bf16.msra.mxu0 0
    %365 = vmatprep.subr.bf16.mxu0 0
    %366 = vmatpush1.bf16.msra.mxu0 0
    %367 = vmatprep.subr.bf16.mxu0 0
    %368 = vmatpush1.bf16.msra.mxu0 0
    %369 = vmatprep.subr.bf16.mxu0 0
    %370 = vmatpush1.bf16.msra.mxu0 0
    %371 = vmatprep.subr.bf16.mxu0 0
    %372 = vmatpush1.bf16.msra.mxu0 0
    %373 = vmatprep.subr.bf16.mxu0 0
    %374 = vmatpush1.bf16.msra.mxu0 0
    %375 = vmatprep.subr.bf16.mxu0 0
    %376 = vmatpush1.bf16.msra.mxu0 0
    %377 = vmatprep.subr.bf16.mxu0 0
    %378 = vmatpush1.bf16.msra.mxu0 0
    %379 = vmatprep.mubr.bf16.mxu0 0
    %380 = vmatmul.mubr.bf16.gmra.mrb[0].mxu0 %v275
    %v381 = vpop.f32.mrb[0].mxu0
    %v382 = vadd.f32 %v297, %v381
    %v383 = vpop.f32.mrb[0].mxu0
    %v384 = vpop.f32.mrb[0].mxu0
    %v385 = vadd.f32 %v297, %v384
    %v386 = vpop.f32.mrb[0].mxu0
    %387 = vdwg.mxu0
    %388 = vst [vmem:[#allocation10] sm:$0xff] %v382
    %389 = vst [vmem:[#allocation10 + $0x8] sm:$0xff] %v385
    // Predicated region
    $region46: #{tpu_custom_call.1} parent=1 // pred_check
      _
    $region47: #{tpu_custom_call.1} parent=1 // pred_check_branch
      %391 = sbr.rel (0) target = $region49
    $region48: #{tpu_custom_call.1} parent=1 // pred_region
      %s393 = ssub.s32 256, 256
      %394 = vsyncadd [#allocation4], %s393
      %s395 = sshll.u32 [#allocation10], 4
      %s396 = int_to_ptr.vmem [resolvable:$true] %s395
      %401 = dma.vmem_to_hbm [thread:$0]  %s396, 256, %s7, [#allocation4], 128, 128, 8
    $region49: #{tpu_custom_call.1} parent=1 // pred_fallthru
      _
    // Predicated region
    $region50: #{tpu_custom_call.1} parent=1 // pred_check
      _
    $region51: #{tpu_custom_call.1} parent=1 // pred_check_branch
      %403 = sbr.rel (0) target = $region53
    $region52: #{tpu_custom_call.1} parent=1 // pred_region
      %404 = dma.done [#allocation4], 256
    $region53: #{tpu_custom_call.1} parent=1 // pred_fallthru
      _
    %405 = vsyncpa [#allocation3], 1
    %406 = vsyncpa [#allocation6], 1
    %407 = vsyncpa [#allocation9], 1
    %408 = vsyncpa [#allocation4], 1

</llo_original>
